<compile_context>
chip_gen: v6e
topology: v6e:2x2x1
jax: 0.10.0
libtpu: 0.0.40
codegen_flags: <defaults>
</compile_context>

<pallas_src>
import functools

import jax
import jax.numpy as jnp
from jax.experimental import pallas as pl
from jax.experimental.pallas import tpu as pltpu

EPS = 1e-5          # InstanceNorm2d default eps
NEG_SLOPE = 1e-2    # LeakyReLU negative_slope in nnU-Net props


def _dense_up_block_kernel(x_ref, masks_ref, w_ref, gb_ref, o_ref,
                           *, H, W, HWp, Nb, Cin, padded):
  aim = Cin // 2
  HW = H * W
  inv_hw = 1.0 / float(HW)

  masks = masks_ref[...]                     # (9, HWp) f32, resident
  valid = masks[4:5]                         # center-tap row == validity mask
  gb = gb_ref[...]                           # (aim, 8): [g0,be0,g1,be1,...]

  # Static column windows into the packed bf16 weight slab.
  o0 = 0
  o1 = o0 + Cin            # conv0 (1x1):            (aim, Cin)
  o2 = o1 + 9 * aim        # conv1 (3x3, K-stacked):  (aim, 9*aim)
  o3 = o2 + 18 * aim       # conv2 (3x3, K-stacked):  (aim, 18*aim)
  o4 = o3 + 3 * aim        # conv3 (1x1, 3-way cat):  (aim, 3*aim)
  w0 = w_ref[:, pl.ds(o0, o1 - o0)]
  w1 = w_ref[:, pl.ds(o1, o2 - o1)]
  w2 = w_ref[:, pl.ds(o2, o3 - o2)]
  w3 = w_ref[:, pl.ds(o3, o4 - o3)]

  def dot(w, a):
    # bf16 MXU matmul with f32 accumulation; one cast per (stacked) slab.
    return jnp.dot(w, a.astype(jnp.bfloat16), preferred_element_type=jnp.float32)

  def inorm_lrelu(y, j):
    # Two-pass (mean-subtracted) variance for robustness; biased, eps=1e-5.
    g = gb[:, 2 * j:2 * j + 1]
    b = gb[:, 2 * j + 1:2 * j + 2]
    mean = jnp.sum(y, axis=1, keepdims=True) * inv_hw
    d = y - mean
    if padded:
      d = d * valid                       # keep pad lanes out of the variance
    var = jnp.sum(d * d, axis=1, keepdims=True) * inv_hw
    yn = d * jax.lax.rsqrt(var + EPS) * g + b
    out = jnp.maximum(yn, NEG_SLOPE * yn)
    if padded:
      out = out * valid                   # invariant: pad lanes stay zero
    return out

  def stacked_taps(act):
    # Build the (9*C, HWp) K-stacked activation for a same-padded 3x3 conv:
    # tap (dy,dx) is a lane roll of the flattened image + edge mask.  The
    # center tap needs no mask (pad lanes of `act` are already zero).
    parts = []
    for dy in (-1, 0, 1):
      for dx in (-1, 0, 1):
        k = (dy + 1) * 3 + (dx + 1)
        d = dy * W + dx                   # static python int
        a = act if d == 0 else pltpu.roll(act, shift=(-d) % HWp, axis=1)
        if k != 4:
          a = a * masks[k:k + 1]
        parts.append(a)
    return jnp.concatenate(parts, axis=0)

  # Static unrolled loop over the Nb images of this grid step (Nb is small).
  for bidx in range(Nb):
    x = x_ref[bidx]                                     # (Cin, HWp) f32

    # conv0 (1x1) -> IN -> LeakyReLU                    : residual_1
    x0 = inorm_lrelu(dot(w0, x), 0)

    # conv1 (3x3) -> IN -> LeakyReLU                    : residual_2
    stk_x0 = stacked_taps(x0)                           # (9*aim, HWp)
    out1 = inorm_lrelu(dot(w1, stk_x0), 1)

    # conv2 (3x3) on concat([out_1, residual_1]): concat folded into K,
    # reusing the already-built rolls of x0.
    a2 = jnp.concatenate([stacked_taps(out1), stk_x0], axis=0)   # (18*aim, HWp)
    out2 = inorm_lrelu(dot(w2, a2), 2)

    # conv3 (1x1) on concat([out_2, residual_1, residual_2]) as one matmul
    # over [out2; out1; x0] (weights pre-permuted to match).
    a3 = jnp.concatenate([out2, out1, x0], axis=0)      # (3*aim, HWp)
    out3 = inorm_lrelu(dot(w3, a3), 3)

    o_ref[bidx] = out3.astype(o_ref.dtype)


def _build_masks(H, W, HWp):
  """(9, HWp) f32 per-tap validity masks; row 4 (center) == valid-lane mask."""
  HW = H * W
  pos = jnp.arange(HW, dtype=jnp.int32)
  row = pos // W
  col = pos - row * W
  m_top = row > 0
  m_bot = row < H - 1
  m_left = col > 0
  m_right = col < W - 1
  ones = jnp.ones((HW,), jnp.bool_)
  rows = []
  for dy in (-1, 0, 1):
    for dx in (-1, 0, 1):
      m = ones
      if dy == -1:
        m = m & m_top
      elif dy == 1:
        m = m & m_bot
      if dx == -1:
        m = m & m_left
      elif dx == 1:
        m = m & m_right
      rows.append(m)
  masks = jnp.stack(rows, axis=0).astype(jnp.float32)
  if HWp > HW:
    masks = jnp.pad(masks, ((0, 0), (0, HWp - HW)))
  return masks


def _pick_nb(N):
  """Images per grid step: amortize per-step overhead but keep >=2 parallel
  grid steps when N>=2 so v7x's two TensorCores both get work."""
  if N <= 2:
    return 1
  for nb in range(min(8, N // 2), 0, -1):
    if N % nb == 0:
      return nb
  return 1


def dense_up_block(x_nchw, params, nb=None):
  """x_nchw: (N, Cin, H, W) float32; returns (N, Cin//2, H, W) float32."""
  N, Cin, H, W = x_nchw.shape
  aim = Cin // 2
  HW = H * W
  HWp = ((HW + 127) // 128) * 128          # lane-dense last dim
  padded = HWp != HW

  (w0, b0, g0, be0, w1, b1, g1, be1, w2, b2, g2, be2,
   w3a, w3b, w3c, b3, g3, be3) = params
  del b0, b1, b2, b3   # conv biases are cancelled exactly by InstanceNorm

  # NCHW -> (N, C, HWp): channels in sublanes, spatial in lanes (zero-padded).
  x2d = x_nchw.reshape(N, Cin, HW)
  if padded:
    x2d = jnp.pad(x2d, ((0, 0), (0, 0), (0, HWp - HW)))

  # --- K-stacked / packed weights -------------------------------------------
  # conv taps stored as (9, out, in) with tap k = (dy+1)*3+(dx+1).
  w1m = jnp.transpose(w1, (1, 0, 2)).reshape(aim, 9 * aim)
  w2o = jnp.transpose(w2[:, :, :aim], (1, 0, 2)).reshape(aim, 9 * aim)  # on out1
  w2x = jnp.transpose(w2[:, :, aim:], (1, 0, 2)).reshape(aim, 9 * aim)  # on x0
  w2m = jnp.concatenate([w2o, w2x], axis=1)                # acts on [stk_out1; stk_x0]
  w3m = jnp.concatenate([w3a, w3c, w3b], axis=1)           # acts on [out2; out1; x0]
  w_packed = jnp.concatenate([w0, w1m, w2m, w3m], axis=1).astype(jnp.bfloat16)
  Ktot = w_packed.shape[1]                                 # Cin + 30*aim

  gb = jnp.stack([g0, be0, g1, be1, g2, be2, g3, be3],
                 axis=1).astype(jnp.float32)               # (aim, 8)
  masks = _build_masks(H, W, HWp)                          # (9, HWp)

  if nb is None:
    nb = _pick_nb(N)
  assert N % nb == 0, (N, nb)
  grid = (N // nb,)

  kernel = functools.partial(_dense_up_block_kernel, H=H, W=W, HWp=HWp,
                             Nb=nb, Cin=Cin, padded=padded)

  in_specs = [
      pl.BlockSpec((nb, Cin, HWp), lambda n: (n, 0, 0)),   # input images
      pl.BlockSpec((9, HWp), lambda n: (0, 0)),            # tap masks (resident)
      pl.BlockSpec((aim, Ktot), lambda n: (0, 0)),         # packed bf16 weights
      pl.BlockSpec((aim, 8), lambda n: (0, 0)),            # gamma/beta
  ]
  out_spec = pl.BlockSpec((nb, aim, HWp), lambda n: (n, 0, 0))

  # Explicit VMEM footprint estimate (double-buffered blocks + resident params
  # + live intermediates), 2x headroom, capped at 48 MiB (safe on v7x's 64 MiB
  # per-TC VMEM; conservative-but-plenty on v5e/v6e's 128 MiB).
  plane = aim * HWp * 4
  foot = (2 * nb * (Cin + aim) * HWp * 4      # in/out blocks, double-buffered
          + 2 * 16 * HWp * 4                  # masks (sublane-padded)
          + 2 * 16 * Ktot * 2 + 2 * 8 * 128 * 4
          + 44 * plane)                       # x0/out1/out2/out3 + stacked slabs
  vmem_limit = int(min(48 << 20, max(32 << 20, 2 * foot)))

  out = pl.pallas_call(
      kernel,
      out_shape=jax.ShapeDtypeStruct((N, aim, HWp), jnp.float32),
      grid_spec=pltpu.PrefetchScalarGridSpec(
          num_scalar_prefetch=0,
          grid=grid,
          in_specs=in_specs,
          out_specs=out_spec),
      compiler_params=pltpu.CompilerParams(
          dimension_semantics=("parallel",),
          vmem_limit_bytes=vmem_limit),
  )(x2d, masks, w_packed, gb)

  if padded:
    out = out[:, :, :HW]
  return out.reshape(N, aim, H, W)


def init_params(key, in_planes):
  """Deterministic synthetic parameters matching the module's shapes.

  Conv weights are stored as (taps, out_ch, in_ch) with tap = (dy+1)*3+(dx+1).
  """
  aim = in_planes // 2
  ks = jax.random.split(key, 18)

  def rnd(k_, shape, scale=0.2):
    return jax.random.normal(k_, shape, jnp.float32) * scale

  w0 = rnd(ks[0], (aim, in_planes))          # conv0 1x1
  b0 = rnd(ks[1], (aim,), 0.05)
  g0 = 1.0 + rnd(ks[2], (aim,), 0.05)
  be0 = rnd(ks[3], (aim,), 0.05)
  w1 = rnd(ks[4], (9, aim, aim))             # conv1 3x3
  b1 = rnd(ks[5], (aim,), 0.05)
  g1 = 1.0 + rnd(ks[6], (aim,), 0.05)
  be1 = rnd(ks[7], (aim,), 0.05)
  w2 = rnd(ks[8], (9, aim, 2 * aim))         # conv2 3x3 on [out_1, residual_1]
  b2 = rnd(ks[9], (aim,), 0.05)
  g2 = 1.0 + rnd(ks[10], (aim,), 0.05)
  be2 = rnd(ks[11], (aim,), 0.05)
  w3a = rnd(ks[12], (aim, aim))              # conv3 thirds: out_2, res_1, res_2
  w3b = rnd(ks[13], (aim, aim))
  w3c = rnd(ks[14], (aim, aim))
  b3 = rnd(ks[15], (aim,), 0.05)
  g3 = 1.0 + rnd(ks[16], (aim,), 0.05)
  be3 = rnd(ks[17], (aim,), 0.05)
  return (w0, b0, g0, be0, w1, b1, g1, be1, w2, b2, g2, be2,
          w3a, w3b, w3c, b3, g3, be3)


def reference(x, params):
  """Pure-JAX f32 reference of the PyTorch forward (NCHW in / NCHW out)."""
  (w0, b0, g0, be0, w1, b1, g1, be1, w2, b2, g2, be2,
   w3a, w3b, w3c, b3, g3, be3) = params

  def bvec(v):
    return v.reshape(1, -1, 1, 1)

  def inorm_lrelu(y, g, b):
    mean = y.mean(axis=(2, 3), keepdims=True)
    var = ((y - mean) ** 2).mean(axis=(2, 3), keepdims=True)
    yn = (y - mean) / jnp.sqrt(var + EPS) * bvec(g) + bvec(b)
    return jnp.where(yn > 0, yn, NEG_SLOPE * yn)

  def conv1x1(y, w, b):
    return jnp.einsum('oc,nchw->nohw', w, y,
                      precision=jax.lax.Precision.HIGHEST) + bvec(b)

  def conv3x3(y, w_taps, b):
    # (9, out, in) -> OIHW, tap k = kh*3 + kw, dy = kh-1, dx = kw-1.
    o, i = w_taps.shape[1], w_taps.shape[2]
    w = jnp.transpose(w_taps.reshape(3, 3, o, i), (2, 3, 0, 1))
    return jax.lax.conv_general_dilated(
        y, w, (1, 1), 'SAME',
        dimension_numbers=('NCHW', 'OIHW', 'NCHW'),
        precision=jax.lax.Precision.HIGHEST) + bvec(b)

  x0 = inorm_lrelu(conv1x1(x, w0, b0), g0, be0)                 # residual_1
  out1 = inorm_lrelu(conv3x3(x0, w1, b1), g1, be1)              # residual_2
  cat1 = jnp.concatenate([out1, x0], axis=1)
  out2 = inorm_lrelu(conv3x3(cat1, w2, b2), g2, be2)
  cat2 = jnp.concatenate([out2, x0, out1], axis=1)
  w3 = jnp.concatenate([w3a, w3b, w3c], axis=1)
  out3 = inorm_lrelu(conv1x1(cat2, w3, b3), g3, be3)
  return out3


if __name__ == "__main__":
  key = jax.random.PRNGKey(0)
  kx, kp, kx2 = jax.random.split(key, 3)

  # Case 1: in_planes=8 -> aim=4, kernel_size=[3,3], H*W already a multiple
  # of 128 (lane-dense without padding).
  N, Cin, H, W = 2, 8, 16, 16
  x = jax.random.normal(kx, (N, Cin, H, W), jnp.float32)
  params = init_params(kp, Cin)

  out = jax.block_until_ready(dense_up_block(x, params))
  assert out.shape == (N, Cin // 2, H, W), out.shape
  ref = reference(x, params)
  err = float(jnp.max(jnp.abs(out - ref)))
  # Tolerance accounts for bf16 MXU matmuls in the kernel vs f32/HIGHEST ref.
  if not bool(jnp.allclose(out, ref, atol=3e-2, rtol=3e-2)):
    raise AssertionError(f"case1 kernel/reference mismatch, max abs err={err}")

  # Case 2: ragged spatial size (H*W=120 -> padded to 128 lanes) exercising
  # the lane-padding / pad-mask path.
  N2, H2, W2 = 2, 10, 12
  x2 = jax.random.normal(kx2, (N2, Cin, H2, W2), jnp.float32)
  out2 = jax.block_until_ready(dense_up_block(x2, params))
  assert out2.shape == (N2, Cin // 2, H2, W2), out2.shape
  ref2 = reference(x2, params)
  err2 = float(jnp.max(jnp.abs(out2 - ref2)))
  if not bool(jnp.allclose(out2, ref2, atol=3e-2, rtol=3e-2)):
    raise AssertionError(f"case2 kernel/reference mismatch, max abs err={err2}")

  print("KERNEL_OK")
</pallas_src>

<mosaic_0001>
module attributes {stable_mosaic.version = 11 : i64} {
  func.func @_dense_up_block_kernel(%arg0: i32, %arg1: memref<1x8x256xf32, #tpu.memory_space<vmem>>, %arg2: memref<9x256xf32, #tpu.memory_space<vmem>>, %arg3: memref<4x128xbf16, #tpu.memory_space<vmem>>, %arg4: memref<4x8xf32, #tpu.memory_space<vmem>>, %arg5: memref<1x4x256xf32, #tpu.memory_space<vmem>>) attributes {dimension_semantics = [#tpu.dimension_semantics<parallel>], iteration_bounds = array<i64: 2>, scalar_prefetch = 0 : i64, scratch_operands = 0 : i64, tpu.core_type = #tpu.core_type<tc>, window_params = [{transform_indices = @transform_0, window_bounds = array<i64: 1, 8, 256>}, {pipeline_mode = #tpu.pipeline_mode<synchronous>, transform_indices = @transform_1, window_bounds = array<i64: 9, 256>}, {pipeline_mode = #tpu.pipeline_mode<synchronous>, transform_indices = @transform_2, window_bounds = array<i64: 4, 128>}, {pipeline_mode = #tpu.pipeline_mode<synchronous>, transform_indices = @transform_3, window_bounds = array<i64: 4, 8>}, {transform_indices = @transform_4, window_bounds = array<i64: 1, 4, 256>}]} {
    %c0 = arith.constant 0 : index
    %c0_0 = arith.constant 0 : index
    %0 = vector.load %arg2[%c0, %c0_0] : memref<9x256xf32, #tpu.memory_space<vmem>>, vector<9x256xf32>
    %c0_1 = arith.constant 0 : index
    %c0_2 = arith.constant 0 : index
    %1 = vector.load %arg4[%c0_1, %c0_2] : memref<4x8xf32, #tpu.memory_space<vmem>>, vector<4x8xf32>
    %c0_3 = arith.constant 0 : index
    %c0_4 = arith.constant 0 : index
    %2 = vector.load %arg3[%c0_3, %c0_4] : memref<4x128xbf16, #tpu.memory_space<vmem>>, vector<4x8xbf16>
    %c0_5 = arith.constant 0 : index
    %c8 = arith.constant 8 : index
    %3 = vector.load %arg3[%c0_5, %c8] : memref<4x128xbf16, #tpu.memory_space<vmem>>, vector<4x36xbf16>
    %c0_6 = arith.constant 0 : index
    %c44 = arith.constant 44 : index
    %4 = vector.load %arg3[%c0_6, %c44] : memref<4x128xbf16, #tpu.memory_space<vmem>>, vector<4x72xbf16>
    %c0_7 = arith.constant 0 : index
    %c116 = arith.constant 116 : index
    %5 = vector.load %arg3[%c0_7, %c116] : memref<4x128xbf16, #tpu.memory_space<vmem>>, vector<4x12xbf16>
    %c0_8 = arith.constant 0 : index
    %c0_9 = arith.constant 0 : index
    %c0_10 = arith.constant 0 : index
    %6 = vector.load %arg1[%c0_8, %c0_9, %c0_10] : memref<1x8x256xf32, #tpu.memory_space<vmem>>, vector<1x8x256xf32>
    %7 = vector.shape_cast %6 : vector<1x8x256xf32> to vector<8x256xf32>
    %8 = arith.truncf %7 : vector<8x256xf32> to vector<8x256xbf16>
    %cst = arith.constant dense<0.000000e+00> : vector<4x256xf32>
    %9 = tpu.matmul %2, %8, %cst {dimension_numbers = #tpu.dot_dimension_numbers<[1], [0], [0], [1], [0, 0, 1, 1], [], []>} : vector<4x8xbf16>, vector<8x256xbf16>, vector<4x256xf32> -> vector<4x256xf32>
    %10 = vector.extract_strided_slice %1 {offsets = [0, 0], sizes = [4, 1], strides = [1, 1]} : vector<4x8xf32> to vector<4x1xf32>
    %11 = vector.extract_strided_slice %1 {offsets = [0, 1], sizes = [4, 1], strides = [1, 1]} : vector<4x8xf32> to vector<4x1xf32>
    %cst_11 = arith.constant dense<0.000000e+00> : vector<4xf32>
    %12 = vector.multi_reduction <add>, %9, %cst_11 [1] : vector<4x256xf32> to vector<4xf32>
    %13 = vector.shape_cast %12 : vector<4xf32> to vector<4x1xf32>
    %cst_12 = arith.constant 3.906250e-03 : f32
    %14 = vector.broadcast %cst_12 : f32 to vector<4x1xf32>
    %15 = arith.mulf %13, %14 : vector<4x1xf32>
    %16 = vector.broadcast %15 : vector<4x1xf32> to vector<4x256xf32>
    %17 = arith.subf %9, %16 : vector<4x256xf32>
    %18 = arith.mulf %17, %17 : vector<4x256xf32>
    %cst_13 = arith.constant dense<0.000000e+00> : vector<4xf32>
    %19 = vector.multi_reduction <add>, %18, %cst_13 [1] : vector<4x256xf32> to vector<4xf32>
    %20 = vector.shape_cast %19 : vector<4xf32> to vector<4x1xf32>
    %cst_14 = arith.constant 3.906250e-03 : f32
    %21 = vector.broadcast %cst_14 : f32 to vector<4x1xf32>
    %22 = arith.mulf %20, %21 : vector<4x1xf32>
    %cst_15 = arith.constant 9.99999974E-6 : f32
    %23 = vector.broadcast %cst_15 : f32 to vector<4x1xf32>
    %24 = arith.addf %22, %23 : vector<4x1xf32>
    %25 = math.rsqrt %24 : vector<4x1xf32>
    %26 = vector.broadcast %25 : vector<4x1xf32> to vector<4x256xf32>
    %27 = arith.mulf %17, %26 : vector<4x256xf32>
    %28 = vector.broadcast %10 : vector<4x1xf32> to vector<4x256xf32>
    %29 = arith.mulf %27, %28 : vector<4x256xf32>
    %30 = vector.broadcast %11 : vector<4x1xf32> to vector<4x256xf32>
    %31 = arith.addf %29, %30 : vector<4x256xf32>
    %cst_16 = arith.constant 0.00999999977 : f32
    %32 = vector.broadcast %cst_16 : f32 to vector<4x256xf32>
    %33 = arith.mulf %32, %31 : vector<4x256xf32>
    %34 = arith.maximumf %31, %33 : vector<4x256xf32>
    %c17_i32 = arith.constant 17 : i32
    %35 = tpu.dynamic_rotate %34 by %c17_i32 dim 1 : vector<4x256xf32>, i32 -> vector<4x256xf32>
    %36 = vector.extract_strided_slice %0 {offsets = [0, 0], sizes = [1, 256], strides = [1, 1]} : vector<9x256xf32> to vector<1x256xf32>
    %37 = vector.broadcast %36 : vector<1x256xf32> to vector<4x256xf32>
    %38 = arith.mulf %35, %37 : vector<4x256xf32>
    %c16_i32 = arith.constant 16 : i32
    %39 = tpu.dynamic_rotate %34 by %c16_i32 dim 1 : vector<4x256xf32>, i32 -> vector<4x256xf32>
    %40 = vector.extract_strided_slice %0 {offsets = [1, 0], sizes = [1, 256], strides = [1, 1]} : vector<9x256xf32> to vector<1x256xf32>
    %41 = vector.broadcast %40 : vector<1x256xf32> to vector<4x256xf32>
    %42 = arith.mulf %39, %41 : vector<4x256xf32>
    %c15_i32 = arith.constant 15 : i32
    %43 = tpu.dynamic_rotate %34 by %c15_i32 dim 1 : vector<4x256xf32>, i32 -> vector<4x256xf32>
    %44 = vector.extract_strided_slice %0 {offsets = [2, 0], sizes = [1, 256], strides = [1, 1]} : vector<9x256xf32> to vector<1x256xf32>
    %45 = vector.broadcast %44 : vector<1x256xf32> to vector<4x256xf32>
    %46 = arith.mulf %43, %45 : vector<4x256xf32>
    %c1_i32 = arith.constant 1 : i32
    %47 = tpu.dynamic_rotate %34 by %c1_i32 dim 1 : vector<4x256xf32>, i32 -> vector<4x256xf32>
    %48 = vector.extract_strided_slice %0 {offsets = [3, 0], sizes = [1, 256], strides = [1, 1]} : vector<9x256xf32> to vector<1x256xf32>
    %49 = vector.broadcast %48 : vector<1x256xf32> to vector<4x256xf32>
    %50 = arith.mulf %47, %49 : vector<4x256xf32>
    %c255_i32 = arith.constant 255 : i32
    %51 = tpu.dynamic_rotate %34 by %c255_i32 dim 1 : vector<4x256xf32>, i32 -> vector<4x256xf32>
    %52 = vector.extract_strided_slice %0 {offsets = [5, 0], sizes = [1, 256], strides = [1, 1]} : vector<9x256xf32> to vector<1x256xf32>
    %53 = vector.broadcast %52 : vector<1x256xf32> to vector<4x256xf32>
    %54 = arith.mulf %51, %53 : vector<4x256xf32>
    %c241_i32 = arith.constant 241 : i32
    %55 = tpu.dynamic_rotate %34 by %c241_i32 dim 1 : vector<4x256xf32>, i32 -> vector<4x256xf32>
    %56 = vector.extract_strided_slice %0 {offsets = [6, 0], sizes = [1, 256], strides = [1, 1]} : vector<9x256xf32> to vector<1x256xf32>
    %57 = vector.broadcast %56 : vector<1x256xf32> to vector<4x256xf32>
    %58 = arith.mulf %55, %57 : vector<4x256xf32>
    %c240_i32 = arith.constant 240 : i32
    %59 = tpu.dynamic_rotate %34 by %c240_i32 dim 1 : vector<4x256xf32>, i32 -> vector<4x256xf32>
    %60 = vector.extract_strided_slice %0 {offsets = [7, 0], sizes = [1, 256], strides = [1, 1]} : vector<9x256xf32> to vector<1x256xf32>
    %61 = vector.broadcast %60 : vector<1x256xf32> to vector<4x256xf32>
    %62 = arith.mulf %59, %61 : vector<4x256xf32>
    %c239_i32 = arith.constant 239 : i32
    %63 = tpu.dynamic_rotate %34 by %c239_i32 dim 1 : vector<4x256xf32>, i32 -> vector<4x256xf32>
    %64 = vector.extract_strided_slice %0 {offsets = [8, 0], sizes = [1, 256], strides = [1, 1]} : vector<9x256xf32> to vector<1x256xf32>
    %65 = vector.broadcast %64 : vector<1x256xf32> to vector<4x256xf32>
    %66 = arith.mulf %63, %65 : vector<4x256xf32>
    %67 = tpu.concatenate %38, %42, %46, %50, %34, %54, %58, %62, %66 in 0 : vector<4x256xf32>, vector<4x256xf32>, vector<4x256xf32>, vector<4x256xf32>, vector<4x256xf32>, vector<4x256xf32>, vector<4x256xf32>, vector<4x256xf32>, vector<4x256xf32> -> vector<36x256xf32>
    %68 = arith.truncf %67 : vector<36x256xf32> to vector<36x256xbf16>
    %cst_17 = arith.constant dense<0.000000e+00> : vector<4x256xf32>
    %69 = tpu.matmul %3, %68, %cst_17 {dimension_numbers = #tpu.dot_dimension_numbers<[1], [0], [0], [1], [0, 0, 1, 1], [], []>} : vector<4x36xbf16>, vector<36x256xbf16>, vector<4x256xf32> -> vector<4x256xf32>
    %70 = vector.extract_strided_slice %1 {offsets = [0, 2], sizes = [4, 1], strides = [1, 1]} : vector<4x8xf32> to vector<4x1xf32>
    %71 = vector.extract_strided_slice %1 {offsets = [0, 3], sizes = [4, 1], strides = [1, 1]} : vector<4x8xf32> to vector<4x1xf32>
    %cst_18 = arith.constant dense<0.000000e+00> : vector<4xf32>
    %72 = vector.multi_reduction <add>, %69, %cst_18 [1] : vector<4x256xf32> to vector<4xf32>
    %73 = vector.shape_cast %72 : vector<4xf32> to vector<4x1xf32>
    %cst_19 = arith.constant 3.906250e-03 : f32
    %74 = vector.broadcast %cst_19 : f32 to vector<4x1xf32>
    %75 = arith.mulf %73, %74 : vector<4x1xf32>
    %76 = vector.broadcast %75 : vector<4x1xf32> to vector<4x256xf32>
    %77 = arith.subf %69, %76 : vector<4x256xf32>
    %78 = arith.mulf %77, %77 : vector<4x256xf32>
    %cst_20 = arith.constant dense<0.000000e+00> : vector<4xf32>
    %79 = vector.multi_reduction <add>, %78, %cst_20 [1] : vector<4x256xf32> to vector<4xf32>
    %80 = vector.shape_cast %79 : vector<4xf32> to vector<4x1xf32>
    %cst_21 = arith.constant 3.906250e-03 : f32
    %81 = vector.broadcast %cst_21 : f32 to vector<4x1xf32>
    %82 = arith.mulf %80, %81 : vector<4x1xf32>
    %cst_22 = arith.constant 9.99999974E-6 : f32
    %83 = vector.broadcast %cst_22 : f32 to vector<4x1xf32>
    %84 = arith.addf %82, %83 : vector<4x1xf32>
    %85 = math.rsqrt %84 : vector<4x1xf32>
    %86 = vector.broadcast %85 : vector<4x1xf32> to vector<4x256xf32>
    %87 = arith.mulf %77, %86 : vector<4x256xf32>
    %88 = vector.broadcast %70 : vector<4x1xf32> to vector<4x256xf32>
    %89 = arith.mulf %87, %88 : vector<4x256xf32>
    %90 = vector.broadcast %71 : vector<4x1xf32> to vector<4x256xf32>
    %91 = arith.addf %89, %90 : vector<4x256xf32>
    %cst_23 = arith.constant 0.00999999977 : f32
    %92 = vector.broadcast %cst_23 : f32 to vector<4x256xf32>
    %93 = arith.mulf %92, %91 : vector<4x256xf32>
    %94 = arith.maximumf %91, %93 : vector<4x256xf32>
    %c17_i32_24 = arith.constant 17 : i32
    %95 = tpu.dynamic_rotate %94 by %c17_i32_24 dim 1 : vector<4x256xf32>, i32 -> vector<4x256xf32>
    %96 = vector.extract_strided_slice %0 {offsets = [0, 0], sizes = [1, 256], strides = [1, 1]} : vector<9x256xf32> to vector<1x256xf32>
    %97 = vector.broadcast %96 : vector<1x256xf32> to vector<4x256xf32>
    %98 = arith.mulf %95, %97 : vector<4x256xf32>
    %c16_i32_25 = arith.constant 16 : i32
    %99 = tpu.dynamic_rotate %94 by %c16_i32_25 dim 1 : vector<4x256xf32>, i32 -> vector<4x256xf32>
    %100 = vector.extract_strided_slice %0 {offsets = [1, 0], sizes = [1, 256], strides = [1, 1]} : vector<9x256xf32> to vector<1x256xf32>
    %101 = vector.broadcast %100 : vector<1x256xf32> to vector<4x256xf32>
    %102 = arith.mulf %99, %101 : vector<4x256xf32>
    %c15_i32_26 = arith.constant 15 : i32
    %103 = tpu.dynamic_rotate %94 by %c15_i32_26 dim 1 : vector<4x256xf32>, i32 -> vector<4x256xf32>
    %104 = vector.extract_strided_slice %0 {offsets = [2, 0], sizes = [1, 256], strides = [1, 1]} : vector<9x256xf32> to vector<1x256xf32>
    %105 = vector.broadcast %104 : vector<1x256xf32> to vector<4x256xf32>
    %106 = arith.mulf %103, %105 : vector<4x256xf32>
    %c1_i32_27 = arith.constant 1 : i32
    %107 = tpu.dynamic_rotate %94 by %c1_i32_27 dim 1 : vector<4x256xf32>, i32 -> vector<4x256xf32>
    %108 = vector.extract_strided_slice %0 {offsets = [3, 0], sizes = [1, 256], strides = [1, 1]} : vector<9x256xf32> to vector<1x256xf32>
    %109 = vector.broadcast %108 : vector<1x256xf32> to vector<4x256xf32>
    %110 = arith.mulf %107, %109 : vector<4x256xf32>
    %c255_i32_28 = arith.constant 255 : i32
    %111 = tpu.dynamic_rotate %94 by %c255_i32_28 dim 1 : vector<4x256xf32>, i32 -> vector<4x256xf32>
    %112 = vector.extract_strided_slice %0 {offsets = [5, 0], sizes = [1, 256], strides = [1, 1]} : vector<9x256xf32> to vector<1x256xf32>
    %113 = vector.broadcast %112 : vector<1x256xf32> to vector<4x256xf32>
    %114 = arith.mulf %111, %113 : vector<4x256xf32>
    %c241_i32_29 = arith.constant 241 : i32
    %115 = tpu.dynamic_rotate %94 by %c241_i32_29 dim 1 : vector<4x256xf32>, i32 -> vector<4x256xf32>
    %116 = vector.extract_strided_slice %0 {offsets = [6, 0], sizes = [1, 256], strides = [1, 1]} : vector<9x256xf32> to vector<1x256xf32>
    %117 = vector.broadcast %116 : vector<1x256xf32> to vector<4x256xf32>
    %118 = arith.mulf %115, %117 : vector<4x256xf32>
    %c240_i32_30 = arith.constant 240 : i32
    %119 = tpu.dynamic_rotate %94 by %c240_i32_30 dim 1 : vector<4x256xf32>, i32 -> vector<4x256xf32>
    %120 = vector.extract_strided_slice %0 {offsets = [7, 0], sizes = [1, 256], strides = [1, 1]} : vector<9x256xf32> to vector<1x256xf32>
    %121 = vector.broadcast %120 : vector<1x256xf32> to vector<4x256xf32>
    %122 = arith.mulf %119, %121 : vector<4x256xf32>
    %c239_i32_31 = arith.constant 239 : i32
    %123 = tpu.dynamic_rotate %94 by %c239_i32_31 dim 1 : vector<4x256xf32>, i32 -> vector<4x256xf32>
    %124 = vector.extract_strided_slice %0 {offsets = [8, 0], sizes = [1, 256], strides = [1, 1]} : vector<9x256xf32> to vector<1x256xf32>
    %125 = vector.broadcast %124 : vector<1x256xf32> to vector<4x256xf32>
    %126 = arith.mulf %123, %125 : vector<4x256xf32>
    %127 = tpu.concatenate %98, %102, %106, %110, %94, %114, %118, %122, %126 in 0 : vector<4x256xf32>, vector<4x256xf32>, vector<4x256xf32>, vector<4x256xf32>, vector<4x256xf32>, vector<4x256xf32>, vector<4x256xf32>, vector<4x256xf32>, vector<4x256xf32> -> vector<36x256xf32>
    %128 = tpu.concatenate %127, %67 in 0 : vector<36x256xf32>, vector<36x256xf32> -> vector<72x256xf32>
    %129 = arith.truncf %128 : vector<72x256xf32> to vector<72x256xbf16>
    %cst_32 = arith.constant dense<0.000000e+00> : vector<4x256xf32>
    %130 = tpu.matmul %4, %129, %cst_32 {dimension_numbers = #tpu.dot_dimension_numbers<[1], [0], [0], [1], [0, 0, 1, 1], [], []>} : vector<4x72xbf16>, vector<72x256xbf16>, vector<4x256xf32> -> vector<4x256xf32>
    %131 = vector.extract_strided_slice %1 {offsets = [0, 4], sizes = [4, 1], strides = [1, 1]} : vector<4x8xf32> to vector<4x1xf32>
    %132 = vector.extract_strided_slice %1 {offsets = [0, 5], sizes = [4, 1], strides = [1, 1]} : vector<4x8xf32> to vector<4x1xf32>
    %cst_33 = arith.constant dense<0.000000e+00> : vector<4xf32>
    %133 = vector.multi_reduction <add>, %130, %cst_33 [1] : vector<4x256xf32> to vector<4xf32>
    %134 = vector.shape_cast %133 : vector<4xf32> to vector<4x1xf32>
    %cst_34 = arith.constant 3.906250e-03 : f32
    %135 = vector.broadcast %cst_34 : f32 to vector<4x1xf32>
    %136 = arith.mulf %134, %135 : vector<4x1xf32>
    %137 = vector.broadcast %136 : vector<4x1xf32> to vector<4x256xf32>
    %138 = arith.subf %130, %137 : vector<4x256xf32>
    %139 = arith.mulf %138, %138 : vector<4x256xf32>
    %cst_35 = arith.constant dense<0.000000e+00> : vector<4xf32>
    %140 = vector.multi_reduction <add>, %139, %cst_35 [1] : vector<4x256xf32> to vector<4xf32>
    %141 = vector.shape_cast %140 : vector<4xf32> to vector<4x1xf32>
    %cst_36 = arith.constant 3.906250e-03 : f32
    %142 = vector.broadcast %cst_36 : f32 to vector<4x1xf32>
    %143 = arith.mulf %141, %142 : vector<4x1xf32>
    %cst_37 = arith.constant 9.99999974E-6 : f32
    %144 = vector.broadcast %cst_37 : f32 to vector<4x1xf32>
    %145 = arith.addf %143, %144 : vector<4x1xf32>
    %146 = math.rsqrt %145 : vector<4x1xf32>
    %147 = vector.broadcast %146 : vector<4x1xf32> to vector<4x256xf32>
    %148 = arith.mulf %138, %147 : vector<4x256xf32>
    %149 = vector.broadcast %131 : vector<4x1xf32> to vector<4x256xf32>
    %150 = arith.mulf %148, %149 : vector<4x256xf32>
    %151 = vector.broadcast %132 : vector<4x1xf32> to vector<4x256xf32>
    %152 = arith.addf %150, %151 : vector<4x256xf32>
    %cst_38 = arith.constant 0.00999999977 : f32
    %153 = vector.broadcast %cst_38 : f32 to vector<4x256xf32>
    %154 = arith.mulf %153, %152 : vector<4x256xf32>
    %155 = arith.maximumf %152, %154 : vector<4x256xf32>
    %156 = tpu.concatenate %155, %94, %34 in 0 : vector<4x256xf32>, vector<4x256xf32>, vector<4x256xf32> -> vector<12x256xf32>
    %157 = arith.truncf %156 : vector<12x256xf32> to vector<12x256xbf16>
    %cst_39 = arith.constant dense<0.000000e+00> : vector<4x256xf32>
    %158 = tpu.matmul %5, %157, %cst_39 {dimension_numbers = #tpu.dot_dimension_numbers<[1], [0], [0], [1], [0, 0, 1, 1], [], []>} : vector<4x12xbf16>, vector<12x256xbf16>, vector<4x256xf32> -> vector<4x256xf32>
    %159 = vector.extract_strided_slice %1 {offsets = [0, 6], sizes = [4, 1], strides = [1, 1]} : vector<4x8xf32> to vector<4x1xf32>
    %160 = vector.extract_strided_slice %1 {offsets = [0, 7], sizes = [4, 1], strides = [1, 1]} : vector<4x8xf32> to vector<4x1xf32>
    %cst_40 = arith.constant dense<0.000000e+00> : vector<4xf32>
    %161 = vector.multi_reduction <add>, %158, %cst_40 [1] : vector<4x256xf32> to vector<4xf32>
    %162 = vector.shape_cast %161 : vector<4xf32> to vector<4x1xf32>
    %cst_41 = arith.constant 3.906250e-03 : f32
    %163 = vector.broadcast %cst_41 : f32 to vector<4x1xf32>
    %164 = arith.mulf %162, %163 : vector<4x1xf32>
    %165 = vector.broadcast %164 : vector<4x1xf32> to vector<4x256xf32>
    %166 = arith.subf %158, %165 : vector<4x256xf32>
    %167 = arith.mulf %166, %166 : vector<4x256xf32>
    %cst_42 = arith.constant dense<0.000000e+00> : vector<4xf32>
    %168 = vector.multi_reduction <add>, %167, %cst_42 [1] : vector<4x256xf32> to vector<4xf32>
    %169 = vector.shape_cast %168 : vector<4xf32> to vector<4x1xf32>
    %cst_43 = arith.constant 3.906250e-03 : f32
    %170 = vector.broadcast %cst_43 : f32 to vector<4x1xf32>
    %171 = arith.mulf %169, %170 : vector<4x1xf32>
    %cst_44 = arith.constant 9.99999974E-6 : f32
    %172 = vector.broadcast %cst_44 : f32 to vector<4x1xf32>
    %173 = arith.addf %171, %172 : vector<4x1xf32>
    %174 = math.rsqrt %173 : vector<4x1xf32>
    %175 = vector.broadcast %174 : vector<4x1xf32> to vector<4x256xf32>
    %176 = arith.mulf %166, %175 : vector<4x256xf32>
    %177 = vector.broadcast %159 : vector<4x1xf32> to vector<4x256xf32>
    %178 = arith.mulf %176, %177 : vector<4x256xf32>
    %179 = vector.broadcast %160 : vector<4x1xf32> to vector<4x256xf32>
    %180 = arith.addf %178, %179 : vector<4x256xf32>
    %cst_45 = arith.constant 0.00999999977 : f32
    %181 = vector.broadcast %cst_45 : f32 to vector<4x256xf32>
    %182 = arith.mulf %181, %180 : vector<4x256xf32>
    %183 = arith.maximumf %180, %182 : vector<4x256xf32>
    %c0_46 = arith.constant 0 : index
    %c0_47 = arith.constant 0 : index
    %c0_48 = arith.constant 0 : index
    %184 = vector.load %arg5[%c0_46, %c0_47, %c0_48] : memref<1x4x256xf32, #tpu.memory_space<vmem>>, vector<1x4x256xf32>
    %185 = vector.shape_cast %184 : vector<1x4x256xf32> to vector<4x256xf32>
    %186 = vector.shape_cast %183 : vector<4x256xf32> to vector<1x4x256xf32>
    tpu.vector_store %arg5[%c0_46, %c0_47, %c0_48], %186 {strides = array<i32>} : memref<1x4x256xf32, #tpu.memory_space<vmem>>, vector<1x4x256xf32>,
    return
  }
  func.func @transform_0(%arg0: i32) -> (i32, i32, i32) {
    %c0_i32 = arith.constant 0 : i32
    %c0_i32_0 = arith.constant 0 : i32
    %c0_i32_1 = arith.constant 0 : i32
    return %arg0, %c0_i32, %c0_i32_0 : i32, i32, i32
  }
  func.func @transform_1(%arg0: i32) -> (i32, i32) {
    %c0_i32 = arith.constant 0 : i32
    %c0_i32_0 = arith.constant 0 : i32
    %c0_i32_1 = arith.constant 0 : i32
    return %c0_i32, %c0_i32_0 : i32, i32
  }
  func.func @transform_2(%arg0: i32) -> (i32, i32) {
    %c0_i32 = arith.constant 0 : i32
    %c0_i32_0 = arith.constant 0 : i32
    %c0_i32_1 = arith.constant 0 : i32
    return %c0_i32, %c0_i32_0 : i32, i32
  }
  func.func @transform_3(%arg0: i32) -> (i32, i32) {
    %c0_i32 = arith.constant 0 : i32
    %c0_i32_0 = arith.constant 0 : i32
    %c0_i32_1 = arith.constant 0 : i32
    return %c0_i32, %c0_i32_0 : i32, i32
  }
  func.func @transform_4(%arg0: i32) -> (i32, i32, i32) {
    %c0_i32 = arith.constant 0 : i32
    %c0_i32_0 = arith.constant 0 : i32
    %c0_i32_1 = arith.constant 0 : i32
    return %arg0, %c0_i32, %c0_i32_0 : i32, i32, i32
  }
}

</mosaic_0001>

<llo_original>
// kernel: tpu_custom_call.1
$region0: #{tpu_custom_call.1}
  #allocation0 [shape = 'u32[]', space=smem, size = 0x4, offset = 0x4, fixed_abs, tag = 'smem constant byte address 0x4 - core index']
  #allocation1 [shape = 'u32[144,128]{1,0:T(1,128)}', space=vmem, size = 0x12000, scoped, tag = 'internal scratch']
  %s0 = inlined_call_operand.hbm [shape: f32[2,8,256], index: 0, kind: input, shape index: {}]
  %s1 = inlined_call_operand.hbm [shape: f32[9,256], index: 1, kind: input, shape index: {}]
  %s2 = inlined_call_operand.hbm [shape: bf16[4,128], index: 2, kind: input, shape index: {}]
  %s3 = inlined_call_operand.vmem [shape: f32[4,8], index: 3, kind: input, shape index: {}]
  %s4 = inlined_call_operand.hbm [shape: f32[2,4,256], index: 4, kind: output, shape index: {}]
  %s5 = sld [smem:[#allocation0]]
  $region61: #{tpu_custom_call.1} parent=0
    _
  %s7 = ssub.s32 1, %s5
  %s8 = scalar_select 0, %s7, %s5
  $region1: #{tpu_custom_call.1} parent=0
    #allocation2 [shape = 'u8[16384]{0}', space=vmem, size = 0x4000, scoped, tag = 'input window, operand 0']
    #allocation3 [shape = 's32[2]{0}', space=sflag, size = 0x8, scoped, tag = 'scoped memory for tpu_custom_call.1']
    #allocation4 [shape = 's32[2]{0}', space=sflag, size = 0x8, scoped, tag = 'scoped memory for tpu_custom_call.1']
    #allocation5 [shape = 'u8[16384]{0}', space=vmem, size = 0x4000, scoped, tag = 'input window, operand 1, single buffered']
    #allocation6 [shape = 's32[1]{0}', space=sflag, size = 0x4, scoped, tag = 'scoped memory for tpu_custom_call.1']
    #allocation7 [shape = 'u8[1024]{0}', space=vmem, size = 0x400, scoped, tag = 'input window, operand 2, single buffered']
    #allocation8 [shape = 'u8[8192]{0}', space=vmem, size = 0x2000, scoped, tag = 'output window, operand 0']
    %9 = vsyncpa [#allocation3], 0
    %s10 = scalar_lea.sflag [#allocation3], 1
    %11 = vsyncpa %s10, 0
    %12 = vsyncpa [#allocation6], 0
    %13 = vsyncpa [#allocation4], 0
    %s14 = scalar_lea.sflag [#allocation4], 1
    %15 = vsyncpa %s14, 0
    loop: start=0, step=1, limit=4
    $region2: #{tpu_custom_call.1} parent=1 // loop_pre_header
      _
    $region3: #{tpu_custom_call.1} parent=1 // loop_header
      %s17 = sphi 0, %s21
      %p18 = scmp.ge.s32.totalorder %s17, 4
      %s27 = sphi 0, %s29
      %s30 = sphi 0, %s27
      %s31 = sphi 0, %s30
      %s47 = sphi 0, %s31
      %s51 = sphi 0, %s51
      %s53 = sphi 0, %s51
      %s54 = sphi 0, %s53
      %s68 = sphi 0, %s54
      %s72 = sphi 0, %s72
      %s74 = sphi 0, %s72
      %s75 = sphi 0, %s74
      %s89 = sphi 0, %s75
      %s93 = sphi 0, %s93
      %s95 = sphi 0, %s93
      %s96 = sphi 0, %s95
      %s110 = sphi 0, %s96
      %s116 = sphi 0, %s118
      %s119 = sphi 0, %s116
      %s120 = sphi 0, %s119
      %s136 = sphi 0, %s120
    $region4: #{tpu_custom_call.1} parent=1 // loop_header_branch
      %20 = sbr.rel (%p18) target = $region8
    $region5: #{tpu_custom_call.1} parent=1 // loop_body
      %s22 = ssub.s32 %s17, 1
      %s23 = ssub.s32 %s17, 2
      %s24 = sadd.s32 %s17, 1
      %s25 = ssub.s32 %s17, %s24
      %p26 = scmp.eq.s32.totalorder %s25, 0
      %s28 = sadd.s32 %s27, 1
      %s29 = scalar_select %p26, %s27, %s28
      %p32 = pneg %p26
      %p33 = scmp.eq.s32.totalorder %s17, 1
      %p34 = por %p32, %p33
      %p35 = scmp.ne.s32.totalorder %s27, %s30
      %p36 = scmp.eq.s32.totalorder %s17, 0
      %p37 = por %p35, %p36
      %p38 = scmp.ne.s32.totalorder %s27, %s30
      %p39 = scmp.eq.s32.totalorder %s22, 1
      %p40 = por %p38, %p39
      %p41 = scmp.ne.s32.totalorder %s30, %s31
      %p42 = scmp.eq.s32.totalorder %s22, 0
      %p43 = por %p41, %p42
      %p44 = scmp.ne.s32.totalorder %s30, %s31
      %p45 = scmp.eq.s32.totalorder %s23, 1
      %p46 = por %p44, %p45
      %p48 = scmp.ne.s32.totalorder %s31, %s47
      %p49 = scmp.eq.s32.totalorder %s23, 0
      %p50 = por %p48, %p49
      %s52 = sadd.s32 %s51, 1
      %p55 = scmp.eq.s32.totalorder %s17, 1
      %p56 = scmp.ne.s32.totalorder %s51, %s53
      %p57 = scmp.eq.s32.totalorder %s17, 0
      %p58 = por %p56, %p57
      %p59 = scmp.ne.s32.totalorder %s51, %s53
      %p60 = scmp.eq.s32.totalorder %s22, 1
      %p61 = por %p59, %p60
      %p62 = scmp.ne.s32.totalorder %s53, %s54
      %p63 = scmp.eq.s32.totalorder %s22, 0
      %p64 = por %p62, %p63
      %p65 = scmp.ne.s32.totalorder %s53, %s54
      %p66 = scmp.eq.s32.totalorder %s23, 1
      %p67 = por %p65, %p66
      %p69 = scmp.ne.s32.totalorder %s54, %s68
      %p70 = scmp.eq.s32.totalorder %s23, 0
      %p71 = por %p69, %p70
      %s73 = sadd.s32 %s72, 1
      %p76 = scmp.eq.s32.totalorder %s17, 1
      %p77 = scmp.ne.s32.totalorder %s72, %s74
      %p78 = scmp.eq.s32.totalorder %s17, 0
      %p79 = por %p77, %p78
      %p80 = scmp.ne.s32.totalorder %s72, %s74
      %p81 = scmp.eq.s32.totalorder %s22, 1
      %p82 = por %p80, %p81
      %p83 = scmp.ne.s32.totalorder %s74, %s75
      %p84 = scmp.eq.s32.totalorder %s22, 0
      %p85 = por %p83, %p84
      %p86 = scmp.ne.s32.totalorder %s74, %s75
      %p87 = scmp.eq.s32.totalorder %s23, 1
      %p88 = por %p86, %p87
      %p90 = scmp.ne.s32.totalorder %s75, %s89
      %p91 = scmp.eq.s32.totalorder %s23, 0
      %p92 = por %p90, %p91
      %s94 = sadd.s32 %s93, 1
      %p97 = scmp.eq.s32.totalorder %s17, 1
      %p98 = scmp.ne.s32.totalorder %s93, %s95
      %p99 = scmp.eq.s32.totalorder %s17, 0
      %p100 = por %p98, %p99
      %p101 = scmp.ne.s32.totalorder %s93, %s95
      %p102 = scmp.eq.s32.totalorder %s22, 1
      %p103 = por %p101, %p102
      %p104 = scmp.ne.s32.totalorder %s95, %s96
      %p105 = scmp.eq.s32.totalorder %s22, 0
      %p106 = por %p104, %p105
      %p107 = scmp.ne.s32.totalorder %s95, %s96
      %p108 = scmp.eq.s32.totalorder %s23, 1
      %p109 = por %p107, %p108
      %p111 = scmp.ne.s32.totalorder %s96, %s110
      %p112 = scmp.eq.s32.totalorder %s23, 0
      %p113 = por %p111, %p112
      %s114 = ssub.s32 %s17, %s24
      %p115 = scmp.eq.s32.totalorder %s114, 0
      %s117 = sadd.s32 %s116, 1
      %s118 = scalar_select %p115, %s116, %s117
      %p121 = pneg %p115
      %p122 = scmp.eq.s32.totalorder %s17, 1
      %p123 = por %p121, %p122
      %p124 = scmp.ne.s32.totalorder %s116, %s119
      %p125 = scmp.eq.s32.totalorder %s17, 0
      %p126 = por %p124, %p125
      %p127 = scmp.ne.s32.totalorder %s116, %s119
      %p128 = scmp.eq.s32.totalorder %s22, 1
      %p129 = por %p127, %p128
      %p130 = scmp.ne.s32.totalorder %s119, %s120
      %p131 = scmp.eq.s32.totalorder %s22, 0
      %p132 = por %p130, %p131
      %p133 = scmp.ne.s32.totalorder %s119, %s120
      %p134 = scmp.eq.s32.totalorder %s23, 1
      %p135 = por %p133, %p134
      %p137 = scmp.ne.s32.totalorder %s120, %s136
      %p138 = scmp.eq.s32.totalorder %s23, 0
      %p139 = por %p137, %p138
      %p140 = scmp.le.s32.totalorder 1, %s17
      %p141 = scmp.lt.s32.totalorder %s17, 3
      %p142 = pnand %p140, %p141
      %p143 = pneg %p142
      // Predicated region
      $region9: #{tpu_custom_call.1} parent=5 // pred_check
        _
      $region10: #{tpu_custom_call.1} parent=5 // pred_check_branch
        %145 = sbr.rel (%p142) target = $region12
      $region11: #{tpu_custom_call.1} parent=5 // pred_region
        %s146 = ssub.s32 %s17, 1
        // Predicated region
        $region13: #{tpu_custom_call.1} parent=11 // pred_check
          %p147 = pneg %p64
        $region14: #{tpu_custom_call.1} parent=11 // pred_check_branch
          %149 = sbr.rel (%p147) target = $region16
        $region15: #{tpu_custom_call.1} parent=11 // pred_region
          %s151 = ssub.s32 512, 512
          %152 = vsyncadd [#allocation6], %s151
          %s153 = sshll.u32 [#allocation5], 4
          %s154 = int_to_ptr.vmem [resolvable:$true] %s153
          %159 = dma.hbm_to_vmem [thread:$0]  %s1, 512, %s154, [#allocation6], 256, 256, 16
        $region16: #{tpu_custom_call.1} parent=11 // pred_fallthru
          _
        // Predicated region
        $region17: #{tpu_custom_call.1} parent=11 // pred_check
          %p160 = pneg %p85
        $region18: #{tpu_custom_call.1} parent=11 // pred_check_branch
          %162 = sbr.rel (%p160) target = $region20
        $region19: #{tpu_custom_call.1} parent=11 // pred_region
          %s164 = ssub.s32 32, 32
          %165 = vsyncadd [#allocation6], %s164
          %s167 = sshll.u32 [#allocation7], 4
          %s168 = int_to_ptr.vmem [resolvable:$true] %s167
          %170 = dma.hbm_to_vmem [thread:$0]  %s2, 32, %s168, [#allocation6]
        $region20: #{tpu_custom_call.1} parent=11 // pred_fallthru
          _
        // Predicated region
        $region21: #{tpu_custom_call.1} parent=11 // pred_check
          %p171 = pneg %p106
        $region22: #{tpu_custom_call.1} parent=11 // pred_check_branch
          %173 = sbr.rel (%p171) target = $region24
        $region23: #{tpu_custom_call.1} parent=11 // pred_region
          _
        $region24: #{tpu_custom_call.1} parent=11 // pred_fallthru
          _
      $region12: #{tpu_custom_call.1} parent=5 // pred_fallthru
        _
      %p174 = scmp.lt.s32.totalorder %s17, 2
      // Predicated region
      $region25: #{tpu_custom_call.1} parent=5 // pred_check
        %p175 = pneg %p174
      $region26: #{tpu_custom_call.1} parent=5 // pred_check_branch
        %177 = sbr.rel (%p175) target = $region28
      $region27: #{tpu_custom_call.1} parent=5 // pred_region
        // Predicated region
        $region29: #{tpu_custom_call.1} parent=27 // pred_check
          %p178 = pneg %p37
        $region30: #{tpu_custom_call.1} parent=27 // pred_check_branch
          %180 = sbr.rel (%p178) target = $region32
        $region31: #{tpu_custom_call.1} parent=27 // pred_region
          %s181 = sand.u32 %s27, 1
          %s182 = scalar_lea.sflag [#allocation3], %s181
          %s183 = sand.u32 %s27, 1
          %s184 = smul.addr %s183, 16
          %s185 = scalar_lea.vmem [#allocation2], %s184
          %s187 = ssub.s32 256, 256
          %188 = vsyncadd %s182, %s187
          %s189 = smul.addr %s17, 2
          %s190 = smul.addr %s189, 128
          %s191 = scalar_lea.hbm %s0, %s190
          %s193 = sshll.u32 %s185, 4
          %s194 = int_to_ptr.vmem [resolvable:$true] %s193
          %196 = dma.hbm_to_vmem [thread:$0]  %s191, 256, %s194, %s182
        $region32: #{tpu_custom_call.1} parent=27 // pred_fallthru
          _
      $region28: #{tpu_custom_call.1} parent=5 // pred_fallthru
        _
      %p197 = scmp.le.s32.totalorder 1, %s17
      %p198 = scmp.lt.s32.totalorder %s17, 3
      %p199 = pnand %p197, %p198
      %p200 = pneg %p199
      // Predicated region
      $region33: #{tpu_custom_call.1} parent=5 // pred_check
        _
      $region34: #{tpu_custom_call.1} parent=5 // pred_check_branch
        %202 = sbr.rel (%p199) target = $region36
      $region35: #{tpu_custom_call.1} parent=5 // pred_region
        %s203 = ssub.s32 %s17, 1
        %s204 = sand.u32 %s30, 1
        %s205 = scalar_lea.sflag [#allocation3], %s204
        %s206 = sand.u32 %s30, 1
        %s207 = smul.addr %s206, 16
        %s208 = scalar_lea.vmem [#allocation2], %s207
        // Predicated region
        $region37: #{tpu_custom_call.1} parent=35 // pred_check
          %p209 = pneg %p43
        $region38: #{tpu_custom_call.1} parent=35 // pred_check_branch
          %211 = sbr.rel (%p209) target = $region40
        $region39: #{tpu_custom_call.1} parent=35 // pred_region
          %212 = dma.done %s205, 256
        $region40: #{tpu_custom_call.1} parent=35 // pred_fallthru
          _
        // Predicated region
        $region41: #{tpu_custom_call.1} parent=35 // pred_check
          %p213 = pneg %p64
        $region42: #{tpu_custom_call.1} parent=35 // pred_check_branch
          %215 = sbr.rel (%p213) target = $region44
        $region43: #{tpu_custom_call.1} parent=35 // pred_region
          %216 = dma.done [#allocation6], 512
        $region44: #{tpu_custom_call.1} parent=35 // pred_fallthru
          _
        // Predicated region
        $region45: #{tpu_custom_call.1} parent=35 // pred_check
          %p217 = pneg %p85
        $region46: #{tpu_custom_call.1} parent=35 // pred_check_branch
          %219 = sbr.rel (%p217) target = $region48
        $region47: #{tpu_custom_call.1} parent=35 // pred_region
          %220 = dma.done [#allocation6], 32
        $region48: #{tpu_custom_call.1} parent=35 // pred_fallthru
          _
        %s221 = sand.u32 %s30, 1
        %s222 = scalar_lea.sflag [#allocation3], %s221
        %s223 = sand.u32 %s30, 1
        %s224 = smul.addr %s223, 16
        %s225 = scalar_lea.vmem [#allocation2], %s224
        %p226 = pneg %p43
        %p227 = pneg %p40
        %p228 = pneg %p64
        %p229 = pneg %p61
        %p230 = pneg %p85
        %p231 = pneg %p82
        %p232 = pneg %p106
        %p233 = pneg %p103
        %p234 = pneg %p132
        %p235 = pneg %p129
        %s236 = sand.u32 %s119, 1
        %s237 = scalar_lea.sflag [#allocation4], %s236
        %s238 = sand.u32 %s119, 1
        %s239 = smul.addr %s238, 8
        %s240 = scalar_lea.vmem [#allocation8], %s239
        %v242 = vld [vmem:[#allocation5] sm:$0xff]
        %v243 = vld [vmem:[#allocation5 + $0x8] sm:$0xff]
        %v244 = vld [vmem:[#allocation5 + $0x10] sm:$0x1]
        %v245 = vld [vmem:[#allocation5 + $0x18] sm:$0x1]
        %v246 = vld [vmem:[%s3] sm:$0xf]
        %v247 = vld [vmem:[#allocation7] sm:$0x3]
        %v248 = vld [vmem:[%s208] sm:$0xff]
        %v249 = vld [vmem:[%s208 + $0x8] sm:$0xff]
        %v250 = vpack.c.bf16 %v248, %v248
        %v251 = vpack.c.bf16 %v249, %v249
        %vm252 = vcmask 64512
        %v254 = vsel %vm252, %v247, 0
        %vm256 = vcmask 1043456
        %v258 = vsel %vm256, %v250, 0
        %v261 = vsel %vm256, %v251, 0
        %263 = vmatprep.subr.bf16.mxu0 0
        %264 = vmatpush1.bf16.msra.mxu0 0
        %265 = vmatprep.subr.bf16.mxu0 0
        %266 = vmatpush1.bf16.msra.mxu0 0
        %267 = vmatprep.subr.bf16.mxu0 0
        %268 = vmatpush1.bf16.msra.mxu0 0
        %269 = vmatprep.subr.bf16.mxu0 0
        %270 = vmatpush1.bf16.msra.mxu0 0
        %271 = vmatprep.subr.bf16.mxu0 0
        %272 = vmatpush1.bf16.msra.mxu0 0
        %273 = vmatprep.subr.bf16.mxu0 0
        %274 = vmatpush1.bf16.msra.mxu0 0
        %275 = vmatprep.subr.bf16.mxu0 0
        %276 = vmatpush1.bf16.msra.mxu0 0
        %277 = vmatprep.subr.bf16.mxu0 %v261
        %278 = vmatpush1.bf16.msra.mxu0 %v258
        %279 = vmatprep.subr.bf16.mxu0 0
        %280 = vmatpush2.bf16.msra.mxu0 0
        %281 = vmatprep.subr.bf16.mxu0 0
        %282 = vmatpush2.bf16.msra.mxu0 0
        %283 = vmatprep.subr.bf16.mxu0 0
        %284 = vmatpush2.bf16.msra.mxu0 0
        %285 = vmatprep.subr.bf16.mxu0 0
        %286 = vmatpush2.bf16.msra.mxu0 0
        %287 = vmatprep.subr.bf16.mxu0 0
        %288 = vmatpush2.bf16.msra.mxu0 0
        %289 = vmatprep.subr.bf16.mxu0 0
        %290 = vmatpush2.bf16.msra.mxu0 0
        %291 = vmatprep.subr.bf16.mxu0 0
        %292 = vmatpush2.bf16.msra.mxu0 0
        %293 = vmatprep.subr.bf16.mxu0 0
        %294 = vmatpush2.bf16.msra.mxu0 0
        %295 = vmatprep.mubr.bf16.mxu0 0
        %296 = vmatmul.mubr.bf16.gmra.mxu0 %v254
        %v297 = vpop.f32.mrf.mxu0
        %v298 = vadd.f32 0.0, %v297
        %v299 = vpop.f32.mrf.mxu0
        %v300 = vadd.f32 0.0, %v299
        %v301 = vpop.f32.mrf.mxu0
        %v302 = vpop.f32.mrf.mxu0
        %303 = vdwg.mxu0
        %v304 = vsel %vm256, %v298, 0.0
        %v305 = vsel %vm256, %v300, 0.0
        %v306 = vadd.f32 %v304, %v305
        %307 = vadd.xlane.f32.xlu0 %v306
        %v308 = vpop.xlane.xlu0 %307
        %v309 = vmul.f32 %v308, 0.00390625
        %v310 = vsub.f32 %v298, %v309
        %v311 = vsub.f32 %v300, %v309
        %v312 = vmul.f32 %v310, %v310
        %v313 = vmul.f32 %v311, %v311
        %v314 = vsel %vm256, %v312, 0.0
        %v315 = vsel %vm256, %v313, 0.0
        %v316 = vadd.f32 %v314, %v315
        %317 = vadd.xlane.f32.xlu0 %v316
        %v318 = vpop.xlane.xlu0 %317
        %v319 = vmul.f32 %v318, 0.00390625
        %v320 = vadd.f32 %v319, 1e-05
        %v321 = vrsqrt.pop %v320
        %v322 = vmul.f32 %v310, %v321
        %v323 = vmul.f32 %v311, %v321
        %325 = vset.pattern.permute.xlu0 0
        %326 = vperm.xlu0 %325, %v246
        %v327 = vpop.permute.xlu0 %326
        %v329 = vmul.f32 %v322, %v327
        %v330 = vmul.f32 %v323, %v327
        %331 = vset.pattern.permute.xlu0 1
        %332 = vperm.xlu0 %331, %v246
        %v333 = vpop.permute.xlu0 %332
        %v335 = vadd.f32 %v329, %v333
        %v336 = vadd.f32 %v330, %v333
        %v337 = vmul.f32 %v335, 0.01
        %v338 = vmul.f32 %v336, 0.01
        %v339 = vmax.f32 %v335, %v337
        %v340 = vmax.f32 %v336, %v338
        %341 = vrot.lane.b32.xlu0 %v339, 17
        %v342 = vpop.permute.xlu0 %341
        %343 = vrot.lane.b32.xlu0 %v340, 17
        %v344 = vpop.permute.xlu0 %343
        %v345 = vlaneseq
        %v346 = vand.u32 %v345, 127
        %vm347 = vcmp.lt.s32.totalorder %v346, 17
        %v348 = vsel %vm347, %v342, %v344
        %v349 = vsel %vm347, %v344, %v342
        %v350 = vlaneseq
        %v351 = vshrl.u32 %v350, 7
        %v352 = vsub.s32 0, %v351
        %v353 = vrot.slane %v242, %v352
        %v354 = vlaneseq
        %v355 = vshrl.u32 %v354, 7
        %v356 = vsub.s32 0, %v355
        %v357 = vrot.slane %v243, %v356
        %v358 = vmul.f32 %v349, %v353
        %v359 = vmul.f32 %v348, %v357
        %360 = vrot.lane.b32.xlu0 %v339, 16
        %v361 = vpop.permute.xlu0 %360
        %362 = vrot.lane.b32.xlu0 %v340, 16
        %v363 = vpop.permute.xlu0 %362
        %vm364 = vcmp.lt.s32.totalorder %v346, 16
        %v365 = vsel %vm364, %v361, %v363
        %v366 = vsel %vm364, %v363, %v361
        %v367 = vlaneseq
        %v368 = vshrl.u32 %v367, 7
        %v369 = vsub.s32 1, %v368
        %v370 = vrot.slane %v242, %v369
        %v371 = vlaneseq
        %v372 = vshrl.u32 %v371, 7
        %v373 = vsub.s32 1, %v372
        %v374 = vrot.slane %v243, %v373
        %v375 = vmul.f32 %v366, %v370
        %v376 = vmul.f32 %v365, %v374
        %377 = vrot.lane.b32.xlu0 %v339, 15
        %v378 = vpop.permute.xlu0 %377
        %379 = vrot.lane.b32.xlu0 %v340, 15
        %v380 = vpop.permute.xlu0 %379
        %vm381 = vcmp.lt.s32.totalorder %v346, 15
        %v382 = vsel %vm381, %v378, %v380
        %v383 = vsel %vm381, %v380, %v378
        %v384 = vlaneseq
        %v385 = vshrl.u32 %v384, 7
        %v386 = vsub.s32 2, %v385
        %v387 = vrot.slane %v242, %v386
        %v388 = vlaneseq
        %v389 = vshrl.u32 %v388, 7
        %v390 = vsub.s32 2, %v389
        %v391 = vrot.slane %v243, %v390
        %v392 = vmul.f32 %v383, %v387
        %v393 = vmul.f32 %v382, %v391
        %394 = vrot.lane.b32.xlu0 %v339, 1
        %v395 = vpop.permute.xlu0 %394
        %396 = vrot.lane.b32.xlu0 %v340, 1
        %v397 = vpop.permute.xlu0 %396
        %vm398 = vcmp.lt.s32.totalorder %v346, 1
        %v399 = vsel %vm398, %v395, %v397
        %v400 = vsel %vm398, %v397, %v395
        %v401 = vlaneseq
        %v402 = vshrl.u32 %v401, 7
        %v403 = vsub.s32 3, %v402
        %v404 = vrot.slane %v242, %v403
        %v405 = vlaneseq
        %v406 = vshrl.u32 %v405, 7
        %v407 = vsub.s32 3, %v406
        %v408 = vrot.slane %v243, %v407
        %v409 = vmul.f32 %v400, %v404
        %v410 = vmul.f32 %v399, %v408
        %411 = vrot.lane.b32.xlu0 %v339, 127
        %v412 = vpop.permute.xlu0 %411
        %413 = vrot.lane.b32.xlu0 %v340, 127
        %v414 = vpop.permute.xlu0 %413
        %vm415 = vcmp.lt.s32.totalorder %v346, 127
        %v416 = vsel %vm415, %v412, %v414
        %v417 = vsel %vm415, %v414, %v412
        %v418 = vlaneseq
        %v419 = vshrl.u32 %v418, 7
        %v420 = vsub.s32 5, %v419
        %v421 = vrot.slane %v242, %v420
        %v422 = vlaneseq
        %v423 = vshrl.u32 %v422, 7
        %v424 = vsub.s32 5, %v423
        %v425 = vrot.slane %v243, %v424
        %v426 = vmul.f32 %v416, %v421
        %v427 = vmul.f32 %v417, %v425
        %428 = vrot.lane.b32.xlu0 %v339, 113
        %v429 = vpop.permute.xlu0 %428
        %430 = vrot.lane.b32.xlu0 %v340, 113
        %v431 = vpop.permute.xlu0 %430
        %vm432 = vcmp.lt.s32.totalorder %v346, 113
        %v433 = vsel %vm432, %v429, %v431
        %v434 = vsel %vm432, %v431, %v429
        %v435 = vlaneseq
        %v436 = vshrl.u32 %v435, 7
        %v437 = vsub.s32 6, %v436
        %v438 = vrot.slane %v242, %v437
        %v439 = vlaneseq
        %v440 = vshrl.u32 %v439, 7
        %v441 = vsub.s32 6, %v440
        %v442 = vrot.slane %v243, %v441
        %v443 = vmul.f32 %v433, %v438
        %v444 = vmul.f32 %v434, %v442
        %445 = vrot.lane.b32.xlu0 %v339, 112
        %v446 = vpop.permute.xlu0 %445
        %447 = vrot.lane.b32.xlu0 %v340, 112
        %v448 = vpop.permute.xlu0 %447
        %vm449 = vcmp.lt.s32.totalorder %v346, 112
        %v450 = vsel %vm449, %v446, %v448
        %v451 = vsel %vm449, %v448, %v446
        %v452 = vlaneseq
        %v453 = vshrl.u32 %v452, 7
        %v454 = vsub.s32 7, %v453
        %v455 = vrot.slane %v242, %v454
        %v456 = vlaneseq
        %v457 = vshrl.u32 %v456, 7
        %v458 = vsub.s32 7, %v457
        %v459 = vrot.slane %v243, %v458
        %v460 = vmul.f32 %v450, %v455
        %v461 = vmul.f32 %v451, %v459
        %462 = vrot.lane.b32.xlu0 %v339, 111
        %v463 = vpop.permute.xlu0 %462
        %464 = vrot.lane.b32.xlu0 %v340, 111
        %v465 = vpop.permute.xlu0 %464
        %vm466 = vcmp.lt.s32.totalorder %v346, 111
        %v467 = vsel %vm466, %v463, %v465
        %v468 = vsel %vm466, %v465, %v463
        %v469 = vlaneseq
        %v470 = vshrl.u32 %v469, 7
        %v471 = vsub.s32 0, %v470
        %v472 = vrot.slane %v244, %v471
        %v473 = vlaneseq
        %v474 = vshrl.u32 %v473, 7
        %v475 = vsub.s32 0, %v474
        %v476 = vrot.slane %v245, %v475
        %v477 = vmul.f32 %v467, %v472
        %v478 = vmul.f32 %v468, %v476
        %v481 = vrot.slane %v375, 4
        %v482 = vrot.slane %v376, 4
        %v487 = vrot.slane %v409, 4
        %v488 = vrot.slane %v410, 4
        %v493 = vrot.slane %v426, 4
        %v494 = vrot.slane %v427, 4
        %v499 = vrot.slane %v460, 4
        %v500 = vrot.slane %v461, 4
        %v503 = vsel %vm256, %v358, %v481
        %v504 = vsel %vm256, %v359, %v482
        %v505 = vsel %vm256, %v392, %v487
        %v506 = vsel %vm256, %v393, %v488
        %v507 = vsel %vm256, %v339, %v493
        %v508 = vsel %vm256, %v340, %v494
        %v509 = vsel %vm256, %v443, %v499
        %v510 = vsel %vm256, %v444, %v500
        %v511 = vpack.c.bf16 %v505, %v503
        %v512 = vpack.c.bf16 %v506, %v504
        %v513 = vpack.c.bf16 %v509, %v507
        %v514 = vpack.c.bf16 %v510, %v508
        %v515 = vpack.c.bf16 %v477, %v477
        %v516 = vpack.c.bf16 %v478, %v478
        %v519 = vunpack.c.l.s4 1983009808
        %v520 = vunpack.c.0.s8 %v519
        %v521 = vlaneseq
        %v522 = vshrl.u32 %v521, 7
        %v523 = vsub.s32 %v520, %v522
        %v524 = vrot.slane %v247, %v523
        %525 = vrot.lane.b32.xlu0 %v524, 120
        %v526 = vpop.permute.xlu0 %525
        %vm527 = vcmask 293888
        %v529 = vsel %vm527, %v526, 0
        %vm531 = vcmask 1041408
        %v533 = vsel %vm531, %v515, 0
        %v536 = vsel %vm531, %v516, 0
        %538 = vmatprep.subr.bf16.mxu0 0
        %539 = vmatpush1.bf16.msra.mxu0 0
        %540 = vmatprep.subr.bf16.mxu0 0
        %541 = vmatpush1.bf16.msra.mxu0 0
        %542 = vmatprep.subr.bf16.mxu0 0
        %543 = vmatpush1.bf16.msra.mxu0 0
        %544 = vmatprep.subr.bf16.mxu0 0
        %545 = vmatpush1.bf16.msra.mxu0 0
        %546 = vmatprep.subr.bf16.mxu0 0
        %547 = vmatpush1.bf16.msra.mxu0 0
        %548 = vmatprep.subr.bf16.mxu0 %v536
        %549 = vmatpush1.bf16.msra.mxu0 %v533
        %550 = vmatprep.subr.bf16.mxu0 %v514
        %551 = vmatpush1.bf16.msra.mxu0 %v513
        %552 = vmatprep.subr.bf16.mxu0 %v512
        %553 = vmatpush1.bf16.msra.mxu0 %v511
        %554 = vmatprep.subr.bf16.mxu0 0
        %555 = vmatpush2.bf16.msra.mxu0 0
        %556 = vmatprep.subr.bf16.mxu0 0
        %557 = vmatpush2.bf16.msra.mxu0 0
        %558 = vmatprep.subr.bf16.mxu0 0
        %559 = vmatpush2.bf16.msra.mxu0 0
        %560 = vmatprep.subr.bf16.mxu0 0
        %561 = vmatpush2.bf16.msra.mxu0 0
        %562 = vmatprep.subr.bf16.mxu0 0
        %563 = vmatpush2.bf16.msra.mxu0 0
        %564 = vmatprep.subr.bf16.mxu0 0
        %565 = vmatpush2.bf16.msra.mxu0 0
        %566 = vmatprep.subr.bf16.mxu0 0
        %567 = vmatpush2.bf16.msra.mxu0 0
        %568 = vmatprep.subr.bf16.mxu0 0
        %569 = vmatpush2.bf16.msra.mxu0 0
        %570 = vmatprep.mubr.bf16.mxu0 0
        %571 = vmatmul.mubr.bf16.gmra.mxu0 %v529
        %v572 = vpop.f32.mrf.mxu0
        %v573 = vadd.f32 0.0, %v572
        %v574 = vpop.f32.mrf.mxu0
        %v575 = vadd.f32 0.0, %v574
        %v576 = vpop.f32.mrf.mxu0
        %v577 = vpop.f32.mrf.mxu0
        %578 = vdwg.mxu0
        %v579 = vsel %vm256, %v573, 0.0
        %v580 = vsel %vm256, %v575, 0.0
        %v581 = vadd.f32 %v579, %v580
        %582 = vadd.xlane.f32.xlu0 %v581
        %v583 = vpop.xlane.xlu0 %582
        %v584 = vmul.f32 %v583, 0.00390625
        %v585 = vsub.f32 %v573, %v584
        %v586 = vsub.f32 %v575, %v584
        %v587 = vmul.f32 %v585, %v585
        %v588 = vmul.f32 %v586, %v586
        %v589 = vsel %vm256, %v587, 0.0
        %v590 = vsel %vm256, %v588, 0.0
        %v591 = vadd.f32 %v589, %v590
        %592 = vadd.xlane.f32.xlu0 %v591
        %v593 = vpop.xlane.xlu0 %592
        %v594 = vmul.f32 %v593, 0.00390625
        %v595 = vadd.f32 %v594, 1e-05
        %v596 = vrsqrt.pop %v595
        %v597 = vmul.f32 %v585, %v596
        %v598 = vmul.f32 %v586, %v596
        %599 = vset.pattern.permute.xlu0 2
        %600 = vperm.xlu0 %599, %v246
        %v601 = vpop.permute.xlu0 %600
        %v603 = vmul.f32 %v597, %v601
        %v604 = vmul.f32 %v598, %v601
        %605 = vset.pattern.permute.xlu0 3
        %606 = vperm.xlu0 %605, %v246
        %v607 = vpop.permute.xlu0 %606
        %v609 = vadd.f32 %v603, %v607
        %v610 = vadd.f32 %v604, %v607
        %v611 = vmul.f32 %v609, 0.01
        %v612 = vmul.f32 %v610, 0.01
        %v613 = vmax.f32 %v609, %v611
        %v614 = vmax.f32 %v610, %v612
        %615 = vrot.lane.b32.xlu0 %v613, 17
        %v616 = vpop.permute.xlu0 %615
        %617 = vrot.lane.b32.xlu0 %v614, 17
        %v618 = vpop.permute.xlu0 %617
        %v619 = vsel %vm347, %v616, %v618
        %v620 = vsel %vm347, %v618, %v616
        %v621 = vmul.f32 %v620, %v353
        %v622 = vmul.f32 %v619, %v357
        %623 = vrot.lane.b32.xlu0 %v613, 16
        %v624 = vpop.permute.xlu0 %623
        %625 = vrot.lane.b32.xlu0 %v614, 16
        %v626 = vpop.permute.xlu0 %625
        %v627 = vsel %vm364, %v624, %v626
        %v628 = vsel %vm364, %v626, %v624
        %v629 = vmul.f32 %v628, %v370
        %v630 = vmul.f32 %v627, %v374
        %631 = vrot.lane.b32.xlu0 %v613, 15
        %v632 = vpop.permute.xlu0 %631
        %633 = vrot.lane.b32.xlu0 %v614, 15
        %v634 = vpop.permute.xlu0 %633
        %v635 = vsel %vm381, %v632, %v634
        %v636 = vsel %vm381, %v634, %v632
        %v637 = vmul.f32 %v636, %v387
        %v638 = vmul.f32 %v635, %v391
        %639 = vrot.lane.b32.xlu0 %v613, 1
        %v640 = vpop.permute.xlu0 %639
        %641 = vrot.lane.b32.xlu0 %v614, 1
        %v642 = vpop.permute.xlu0 %641
        %v643 = vsel %vm398, %v640, %v642
        %v644 = vsel %vm398, %v642, %v640
        %v645 = vmul.f32 %v644, %v404
        %v646 = vmul.f32 %v643, %v408
        %647 = vrot.lane.b32.xlu0 %v613, 127
        %v648 = vpop.permute.xlu0 %647
        %649 = vrot.lane.b32.xlu0 %v614, 127
        %v650 = vpop.permute.xlu0 %649
        %v651 = vsel %vm415, %v648, %v650
        %v652 = vsel %vm415, %v650, %v648
        %v653 = vmul.f32 %v651, %v421
        %v654 = vmul.f32 %v652, %v425
        %655 = vrot.lane.b32.xlu0 %v613, 113
        %v656 = vpop.permute.xlu0 %655
        %657 = vrot.lane.b32.xlu0 %v614, 113
        %v658 = vpop.permute.xlu0 %657
        %v659 = vsel %vm432, %v656, %v658
        %v660 = vsel %vm432, %v658, %v656
        %v661 = vmul.f32 %v659, %v438
        %v662 = vmul.f32 %v660, %v442
        %663 = vrot.lane.b32.xlu0 %v613, 112
        %v664 = vpop.permute.xlu0 %663
        %665 = vrot.lane.b32.xlu0 %v614, 112
        %v666 = vpop.permute.xlu0 %665
        %v667 = vsel %vm449, %v664, %v666
        %v668 = vsel %vm449, %v666, %v664
        %v669 = vmul.f32 %v667, %v455
        %v670 = vmul.f32 %v668, %v459
        %671 = vrot.lane.b32.xlu0 %v613, 111
        %v672 = vpop.permute.xlu0 %671
        %673 = vrot.lane.b32.xlu0 %v614, 111
        %v674 = vpop.permute.xlu0 %673
        %v675 = vsel %vm466, %v672, %v674
        %v676 = vsel %vm466, %v674, %v672
        %v677 = vmul.f32 %v675, %v472
        %v678 = vmul.f32 %v676, %v476
        %v681 = vrot.slane %v629, 4
        %v682 = vrot.slane %v630, 4
        %v687 = vrot.slane %v645, 4
        %v688 = vrot.slane %v646, 4
        %v693 = vrot.slane %v653, 4
        %v694 = vrot.slane %v654, 4
        %v699 = vrot.slane %v669, 4
        %v700 = vrot.slane %v670, 4
        %v703 = vsel %vm256, %v621, %v681
        %v704 = vsel %vm256, %v622, %v682
        %v705 = vsel %vm256, %v637, %v687
        %v706 = vsel %vm256, %v638, %v688
        %v707 = vsel %vm256, %v613, %v693
        %v708 = vsel %vm256, %v614, %v694
        %v709 = vsel %vm256, %v661, %v699
        %v710 = vsel %vm256, %v662, %v700
        %v721 = vrot.slane %v503, 4
        %v722 = vrot.slane %v504, 4
        %v723 = vrot.slane %v505, 4
        %v724 = vsel %vm256, %v721, %v723
        %v725 = vrot.slane %v506, 4
        %v726 = vsel %vm256, %v722, %v725
        %v727 = vrot.slane %v507, 4
        %v728 = vsel %vm256, %v723, %v727
        %v729 = vrot.slane %v508, 4
        %v730 = vsel %vm256, %v725, %v729
        %v731 = vrot.slane %v509, 4
        %v732 = vsel %vm256, %v727, %v731
        %v733 = vrot.slane %v510, 4
        %v734 = vsel %vm256, %v729, %v733
        %v735 = vrot.slane %v477, 4
        %v736 = vsel %vm256, %v731, %v735
        %v737 = vrot.slane %v478, 4
        %v738 = vsel %vm256, %v733, %v737
        %v749 = vsel %vm256, %v677, %v721
        %v750 = vsel %vm256, %v678, %v722
        %v751 = vpack.c.bf16 %v705, %v703
        %v752 = vpack.c.bf16 %v706, %v704
        %v753 = vpack.c.bf16 %v709, %v707
        %v754 = vpack.c.bf16 %v710, %v708
        %v755 = vpack.c.bf16 %v724, %v749
        %v756 = vpack.c.bf16 %v726, %v750
        %v757 = vpack.c.bf16 %v732, %v728
        %v758 = vpack.c.bf16 %v734, %v730
        %v759 = vpack.c.bf16 %v736, %v736
        %v760 = vpack.c.bf16 %v738, %v738
        %761 = vrot.lane.b32.xlu0 %v524, 84
        %v762 = vpop.permute.xlu0 %761
        %vm763 = vcmask 588800
        %v765 = vsel %vm763, %v762, 0
        %v768 = vsel %vm256, %v759, 0
        %v771 = vsel %vm256, %v760, 0
        %773 = vmatprep.subr.bf16.mxu0 0
        %774 = vmatpush1.bf16.msra.mxu0 0
        %775 = vmatprep.subr.bf16.mxu0 0
        %776 = vmatpush1.bf16.msra.mxu0 0
        %777 = vmatprep.subr.bf16.mxu0 0
        %778 = vmatpush1.bf16.msra.mxu0 0
        %779 = vmatprep.subr.bf16.mxu0 %v771
        %780 = vmatpush1.bf16.msra.mxu0 %v768
        %781 = vmatprep.subr.bf16.mxu0 %v758
        %782 = vmatpush1.bf16.msra.mxu0 %v757
        %783 = vmatprep.subr.bf16.mxu0 %v756
        %784 = vmatpush1.bf16.msra.mxu0 %v755
        %785 = vmatprep.subr.bf16.mxu0 %v754
        %786 = vmatpush1.bf16.msra.mxu0 %v753
        %787 = vmatprep.subr.bf16.mxu0 %v752
        %788 = vmatpush1.bf16.msra.mxu0 %v751
        %789 = vmatprep.subr.bf16.mxu0 0
        %790 = vmatpush2.bf16.msra.mxu0 0
        %791 = vmatprep.subr.bf16.mxu0 0
        %792 = vmatpush2.bf16.msra.mxu0 0
        %793 = vmatprep.subr.bf16.mxu0 0
        %794 = vmatpush2.bf16.msra.mxu0 0
        %795 = vmatprep.subr.bf16.mxu0 0
        %796 = vmatpush2.bf16.msra.mxu0 0
        %797 = vmatprep.subr.bf16.mxu0 0
        %798 = vmatpush2.bf16.msra.mxu0 0
        %799 = vmatprep.subr.bf16.mxu0 0
        %800 = vmatpush2.bf16.msra.mxu0 0
        %801 = vmatprep.subr.bf16.mxu0 0
        %802 = vmatpush2.bf16.msra.mxu0 0
        %803 = vmatprep.subr.bf16.mxu0 0
        %804 = vmatpush2.bf16.msra.mxu0 0
        %805 = vmatprep.mubr.bf16.mxu0 0
        %806 = vmatmul.mubr.bf16.gmra.mxu0 %v765
        %v807 = vpop.f32.mrf.mxu0
        %v808 = vadd.f32 0.0, %v807
        %v809 = vpop.f32.mrf.mxu0
        %v810 = vadd.f32 0.0, %v809
        %v811 = vpop.f32.mrf.mxu0
        %v812 = vpop.f32.mrf.mxu0
        %813 = vdwg.mxu0
        %v814 = vsel %vm256, %v808, 0.0
        %v815 = vsel %vm256, %v810, 0.0
        %v816 = vadd.f32 %v814, %v815
        %817 = vadd.xlane.f32.xlu0 %v816
        %v818 = vpop.xlane.xlu0 %817
        %v819 = vmul.f32 %v818, 0.00390625
        %v820 = vsub.f32 %v808, %v819
        %v821 = vsub.f32 %v810, %v819
        %v822 = vmul.f32 %v820, %v820
        %v823 = vmul.f32 %v821, %v821
        %v824 = vsel %vm256, %v822, 0.0
        %v825 = vsel %vm256, %v823, 0.0
        %v826 = vadd.f32 %v824, %v825
        %827 = vadd.xlane.f32.xlu0 %v826
        %v828 = vpop.xlane.xlu0 %827
        %v829 = vmul.f32 %v828, 0.00390625
        %v830 = vadd.f32 %v829, 1e-05
        %v831 = vrsqrt.pop %v830
        %v832 = vmul.f32 %v820, %v831
        %v833 = vmul.f32 %v821, %v831
        %834 = vset.pattern.permute.xlu0 4
        %835 = vperm.xlu0 %834, %v246
        %v836 = vpop.permute.xlu0 %835
        %v838 = vmul.f32 %v832, %v836
        %v839 = vmul.f32 %v833, %v836
        %840 = vset.pattern.permute.xlu0 5
        %841 = vperm.xlu0 %840, %v246
        %v842 = vpop.permute.xlu0 %841
        %v844 = vadd.f32 %v838, %v842
        %v845 = vadd.f32 %v839, %v842
        %v846 = vmul.f32 %v844, 0.01
        %v847 = vmul.f32 %v845, 0.01
        %v848 = vmax.f32 %v844, %v846
        %v849 = vmax.f32 %v845, %v847
        %v852 = vrot.slane %v613, 4
        %v853 = vrot.slane %v614, 4
        %v856 = vsel %vm256, %v848, %v852
        %v857 = vsel %vm256, %v849, %v853
        %v858 = vpack.c.bf16 %v339, %v856
        %v859 = vpack.c.bf16 %v340, %v857
        %860 = vrot.lane.b32.xlu0 %v524, 12
        %v861 = vpop.permute.xlu0 %860
        %vm862 = vcmask 97280
        %v864 = vsel %vm862, %v861, 0
        %vm866 = vcmask 1045504
        %v868 = vsel %vm866, %v858, 0
        %v871 = vsel %vm866, %v859, 0
        %873 = vmatprep.subr.bf16.mxu0 0
        %874 = vmatpush1.bf16.msra.mxu0 0
        %875 = vmatprep.subr.bf16.mxu0 0
        %876 = vmatpush1.bf16.msra.mxu0 0
        %877 = vmatprep.subr.bf16.mxu0 0
        %878 = vmatpush1.bf16.msra.mxu0 0
        %879 = vmatprep.subr.bf16.mxu0 0
        %880 = vmatpush1.bf16.msra.mxu0 0
        %881 = vmatprep.subr.bf16.mxu0 0
        %882 = vmatpush1.bf16.msra.mxu0 0
        %883 = vmatprep.subr.bf16.mxu0 0
        %884 = vmatpush1.bf16.msra.mxu0 0
        %885 = vmatprep.subr.bf16.mxu0 0
        %886 = vmatpush1.bf16.msra.mxu0 0
        %887 = vmatprep.subr.bf16.mxu0 %v871
        %888 = vmatpush1.bf16.msra.mxu0 %v868
        %889 = vmatprep.subr.bf16.mxu0 0
        %890 = vmatpush2.bf16.msra.mxu0 0
        %891 = vmatprep.subr.bf16.mxu0 0
        %892 = vmatpush2.bf16.msra.mxu0 0
        %893 = vmatprep.subr.bf16.mxu0 0
        %894 = vmatpush2.bf16.msra.mxu0 0
        %895 = vmatprep.subr.bf16.mxu0 0
        %896 = vmatpush2.bf16.msra.mxu0 0
        %897 = vmatprep.subr.bf16.mxu0 0
        %898 = vmatpush2.bf16.msra.mxu0 0
        %899 = vmatprep.subr.bf16.mxu0 0
        %900 = vmatpush2.bf16.msra.mxu0 0
        %901 = vmatprep.subr.bf16.mxu0 0
        %902 = vmatpush2.bf16.msra.mxu0 0
        %903 = vmatprep.subr.bf16.mxu0 0
        %904 = vmatpush2.bf16.msra.mxu0 0
        %905 = vmatprep.mubr.bf16.mxu0 0
        %906 = vmatmul.mubr.bf16.gmra.mxu0 %v864
        %v907 = vpop.f32.mrf.mxu0
        %v908 = vadd.f32 0.0, %v907
        %v909 = vpop.f32.mrf.mxu0
        %v910 = vadd.f32 0.0, %v909
        %v911 = vpop.f32.mrf.mxu0
        %v912 = vpop.f32.mrf.mxu0
        %913 = vdwg.mxu0
        %v914 = vsel %vm256, %v908, 0.0
        %v915 = vsel %vm256, %v910, 0.0
        %v916 = vadd.f32 %v914, %v915
        %917 = vadd.xlane.f32.xlu0 %v916
        %v918 = vpop.xlane.xlu0 %917
        %v919 = vmul.f32 %v918, 0.00390625
        %v920 = vsub.f32 %v908, %v919
        %v921 = vsub.f32 %v910, %v919
        %v922 = vmul.f32 %v920, %v920
        %v923 = vmul.f32 %v921, %v921
        %v924 = vsel %vm256, %v922, 0.0
        %v925 = vsel %vm256, %v923, 0.0
        %v926 = vadd.f32 %v924, %v925
        %927 = vadd.xlane.f32.xlu0 %v926
        %v928 = vpop.xlane.xlu0 %927
        %v929 = vmul.f32 %v928, 0.00390625
        %v930 = vadd.f32 %v929, 1e-05
        %v931 = vrsqrt.pop %v930
        %v932 = vmul.f32 %v920, %v931
        %v933 = vmul.f32 %v921, %v931
        %934 = vset.pattern.permute.xlu0 6
        %935 = vperm.xlu0 %934, %v246
        %v936 = vpop.permute.xlu0 %935
        %v938 = vmul.f32 %v932, %v936
        %v939 = vmul.f32 %v933, %v936
        %940 = vset.pattern.permute.xlu0 7
        %941 = vperm.xlu0 %940, %v246
        %v942 = vpop.permute.xlu0 %941
        %v944 = vadd.f32 %v938, %v942
        %v945 = vadd.f32 %v939, %v942
        %v946 = vmul.f32 %v944, 0.01
        %v947 = vmul.f32 %v945, 0.01
        %v948 = vmax.f32 %v944, %v946
        %v949 = vmax.f32 %v945, %v947
        %v952 = vcombine.low %v948, %v949
        %954 = vst [vmem:[%s240] sm:$0xff] %v952
        %s955 = sand.u32 %s119, 1
        %s956 = scalar_lea.sflag [#allocation4], %s955
        %s957 = sand.u32 %s119, 1
        %s958 = smul.addr %s957, 8
        %s959 = scalar_lea.vmem [#allocation8], %s958
        // Predicated region
        $region49: #{tpu_custom_call.1} parent=35 // pred_check
          %p960 = pneg %p129
        $region50: #{tpu_custom_call.1} parent=35 // pred_check_branch
          %962 = sbr.rel (%p960) target = $region52
        $region51: #{tpu_custom_call.1} parent=35 // pred_region
          %s964 = ssub.s32 128, 128
          %965 = vsyncadd %s956, %s964
          %s966 = smul.addr %s22, 2
          %s967 = smul.addr %s966, 64
          %s968 = scalar_lea.hbm %s4, %s967
          %s970 = sshll.u32 %s959, 4
          %s971 = int_to_ptr.vmem [resolvable:$true] %s970
          %973 = dma.vmem_to_hbm [thread:$0]  %s971, 128, %s968, %s956
        $region52: #{tpu_custom_call.1} parent=35 // pred_fallthru
          _
      $region36: #{tpu_custom_call.1} parent=5 // pred_fallthru
        _
      %p974 = scmp.le.s32.totalorder 2, %s17
      // Predicated region
      $region53: #{tpu_custom_call.1} parent=5 // pred_check
        %p975 = pneg %p974
      $region54: #{tpu_custom_call.1} parent=5 // pred_check_branch
        %977 = sbr.rel (%p975) target = $region56
      $region55: #{tpu_custom_call.1} parent=5 // pred_region
        %s978 = ssub.s32 %s17, 2
        // Predicated region
        $region57: #{tpu_custom_call.1} parent=55 // pred_check
          %p979 = pneg %p135
        $region58: #{tpu_custom_call.1} parent=55 // pred_check_branch
          %981 = sbr.rel (%p979) target = $region60
        $region59: #{tpu_custom_call.1} parent=55 // pred_region
          %s982 = sand.u32 %s120, 1
          %s983 = scalar_lea.sflag [#allocation4], %s982
          %s984 = sand.u32 %s120, 1
          %s985 = smul.addr %s984, 8
          %s986 = scalar_lea.vmem [#allocation8], %s985
          %987 = dma.done %s983, 128
        $region60: #{tpu_custom_call.1} parent=55 // pred_fallthru
          _
      $region56: #{tpu_custom_call.1} parent=5 // pred_fallthru
        _
    $region6: #{tpu_custom_call.1} parent=1 // loop_footer
      %s21 = sadd.s32 1, %s17
    $region7: #{tpu_custom_call.1} parent=1 // loop_footer_branch
      %16 = sbr.rel target = $region3
    $region8: #{tpu_custom_call.1} parent=1 // loop_exit
      _
    %988 = vsyncpa [#allocation3], 1
    %s989 = scalar_lea.sflag [#allocation3], 1
    %990 = vsyncpa %s989, 1
    %991 = vsyncpa [#allocation6], 1
    %992 = vsyncpa [#allocation4], 1
    %s993 = scalar_lea.sflag [#allocation4], 1
    %994 = vsyncpa %s993, 1

</llo_original>
